<compile_context>
chip_gen: v7x
topology: tpu7x:2x2x1
jax: 0.10.0
libtpu: 0.0.40
codegen_flags: <defaults>
</compile_context>

<pallas_src>
import jax
import jax.numpy as jnp
from jax import lax
from jax.experimental import pallas as pl
from jax.experimental.pallas import tpu as pltpu

_EPS = 1e-8  # per-row norm clamp
# TODO(synk): torch.nn.functional.cosine_similarity clamps the *product* of the two norms
# at eps; this per-row clamp differs only for near-zero embedding rows.

_TB_CAP = 512            # batch-tile cap (query tile rows)
_TR_CAP = 1024           # reference-tile cap (streamed rows per grid step)
_VMEM_BUDGET = 20 * 1024 * 1024   # conservative: fits v7x (64 MiB phys / 32 MiB scoped)
_VMEM_LIMIT = 28 * 1024 * 1024    # raise v5e's 16 MiB default scoped limit


def _round_up(x, m):
    return ((x + m - 1) // m) * m


def _vmem_usage(tb, tr, fp, itemsize):
    # double-buffered query + reference tiles, double-buffered (tb,128) f32 output,
    # plus the (tb,128) f32 running-max scratch.
    return 2 * (tb + tr) * fp * itemsize + 3 * tb * 128 * 4


def _select_tr(r, fp, itemsize):
    tr = min(_round_up(max(r, 1), 128), _TR_CAP)
    while tr > 128 and _vmem_usage(_TB_CAP, tr, fp, itemsize) > _VMEM_BUDGET:
        tr //= 2
    return tr


def _select_tb(b, tr, fp, itemsize):
    tb = min(_round_up(max(b, 1), 16), _TB_CAP)   # 16: native bf16 sublane tile
    while tb > 16 and _vmem_usage(tb, tr, fp, itemsize) > _VMEM_BUDGET:
        tb = max(16, _round_up(tb // 2, 16))
    return tb


def _max_dot_kernel(x_ref, ref_ref, out_ref, runmax_ref):
    """Per grid step: sim tile = x @ ref^T on the MXU, lane-dense running row max."""
    r_idx = pl.program_id(1)

    @pl.when(r_idx == 0)
    def _():
        runmax_ref[...] = jnp.full_like(runmax_ref, -jnp.inf)

    # (TB, Fp) x (TR, Fp), contracted over the last dim of both -> (TB, TR) f32 on MXU.
    # Reference rows are pre-normalized; query norms are applied outside the kernel.
    raw = lax.dot_general(
        x_ref[...], ref_ref[...],
        dimension_numbers=(((1,), (1,)), ((), ())),
        preferred_element_type=jnp.float32)

    # Lane-dense running max: fold the TR/128 aligned lane slabs into (TB, 128) with
    # pure VPU maxes (no cross-lane XLU work in the inner loop).
    tr = raw.shape[1]
    m = runmax_ref[...]
    for c in range(tr // 128):
        m = jnp.maximum(m, raw[:, c * 128:(c + 1) * 128])
    runmax_ref[...] = m

    @pl.when(r_idx == pl.num_programs(1) - 1)
    def _():
        out_ref[...] = runmax_ref[...]     # full-vreg, lane-dense store


def _classification_loss_fn(output, ref_p, *, tr):
    """output: (B, F) query embeddings; ref_p: (Rp, Fp) cached, row-normalized table."""
    B, F = output.shape
    Rp, Fp = ref_p.shape
    cdt = ref_p.dtype
    itemsize = jnp.dtype(cdt).itemsize

    tb = _select_tb(B, tr, Fp, itemsize)
    Bp = _round_up(B, tb)

    # Per-row inverse query norms (deferred out of the kernel: inv_x > 0, so
    # max_r(inv_x * s) == inv_x * max_r(s)). Tiny B-row reduction in plain XLA.
    x32 = output.astype(jnp.float32)
    inv_x = lax.rsqrt(jnp.maximum(jnp.sum(x32 * x32, axis=-1), _EPS * _EPS))   # (B,)

    # Zero-pad batch rows and features (doesn't change dots); cast to the MXU dtype.
    x_p = jnp.pad(output.astype(cdt), ((0, Bp - B), (0, Fp - F)))

    grid = (Bp // tb, Rp // tr)
    raw_max = pl.pallas_call(
        _max_dot_kernel,
        out_shape=jax.ShapeDtypeStruct((Bp, 128), jnp.float32),
        grid_spec=pltpu.PrefetchScalarGridSpec(
            num_scalar_prefetch=0,
            grid=grid,
            in_specs=[
                pl.BlockSpec((tb, Fp), lambda i, r: (i, 0)),   # query tile (resident over r)
                pl.BlockSpec((tr, Fp), lambda i, r: (r, 0)),   # reference tile (streamed)
            ],
            out_specs=pl.BlockSpec((tb, 128), lambda i, r: (i, 0)),
            scratch_shapes=[pltpu.VMEM((tb, 128), jnp.float32)],  # lane-dense running max
        ),
        compiler_params=pltpu.CompilerParams(
            dimension_semantics=("parallel", "arbitrary"),
            vmem_limit_bytes=_VMEM_LIMIT),
    )(x_p, ref_p)

    # Epilogue (tiny): 128->1 lane reduce, deferred inv_x scaling, mean over B.
    row_max = jnp.max(raw_max[:B], axis=-1)                    # (B,)
    return 1.0 - jnp.mean(row_max * inv_x)


_JITTED_LOSS = jax.jit(_classification_loss_fn, static_argnames=("tr",))


class ClassificationLoss:
    """Pallas-TPU equivalent of the PyTorch ClassificationLoss module.

    The reference table (loaded from CSV in the original) is preprocessed once here:
    row-normalized in f32, padded, and cached on device in the compute dtype.
    """

    def __init__(self, data_ref, compute_dtype=None):
        data_ref = jnp.asarray(data_ref)
        assert data_ref.ndim == 2, "Reference table must be 2-D (rows, features)."
        R, F = data_ref.shape
        if compute_dtype is None:
            compute_dtype = data_ref.dtype          # pass jnp.bfloat16 for the MXU fast path
        compute_dtype = jnp.dtype(compute_dtype)
        itemsize = compute_dtype.itemsize

        Fp = _round_up(F, 128)
        tr = _select_tr(R, Fp, itemsize)
        Rp = _round_up(R, tr)

        # Normalize rows in f32 (inv_r folded into the table), pad rows by replicating
        # the (normalized) row 0 — duplicates never change the per-row max — and
        # zero-pad the feature axis to a lane multiple.
        ref32 = data_ref.astype(jnp.float32)
        inv_r = lax.rsqrt(jnp.maximum(
            jnp.sum(ref32 * ref32, axis=-1, keepdims=True), _EPS * _EPS))
        ref_n = ref32 * inv_r
        if Rp > R:
            ref_n = jnp.concatenate(
                [ref_n, jnp.broadcast_to(ref_n[:1], (Rp - R, F))], axis=0)
        ref_n = jnp.pad(ref_n, ((0, 0), (0, Fp - F)))
        self._ref_p = jax.device_put(ref_n.astype(compute_dtype))

        self._num_features = F
        self._tr = tr

    def __call__(self, output):
        assert output.shape[1] == self._num_features, "Number of features must match."
        return _JITTED_LOSS(output, self._ref_p, tr=self._tr)


def classification_loss(output, data_ref):
    """One-shot convenience wrapper (re-preps the table; prefer ClassificationLoss)."""
    return ClassificationLoss(data_ref)(output)


def _reference_loss(output, data_ref):
    # Pure-JAX reference (same eps convention as the kernel).
    xn = output / jnp.maximum(
        jnp.linalg.norm(output, axis=-1, keepdims=True), _EPS)
    rn = data_ref / jnp.maximum(
        jnp.linalg.norm(data_ref, axis=-1, keepdims=True), _EPS)
    sim = xn @ rn.T
    return 1.0 - jnp.mean(jnp.max(sim, axis=-1))


if __name__ == "__main__":
    key = jax.random.PRNGKey(0)
    k_out, k_ref = jax.random.split(key)

    B, F, R = 8, 32, 16  # batch, features, number of reference rows

    # Deterministic synthetic stand-ins: model output embeddings and the
    # "CSV-loaded" reference table (the module's __init__ reads these columns
    # from a file; here we synthesize them in-script).
    output = jax.random.normal(k_out, (B, F), dtype=jnp.float32)
    data_ref = jax.random.normal(k_ref, (R, F), dtype=jnp.float32)

    loss_mod = ClassificationLoss(data_ref)   # table preprocessed/cached once here
    loss = loss_mod(output)
    jax.block_until_ready(loss)

    ref = _reference_loss(output, data_ref)
    assert jnp.allclose(loss, ref, atol=1e-5, rtol=1e-5), (loss, ref)

    print("KERNEL_OK")
</pallas_src>

<mosaic_0001>
module attributes {stable_mosaic.version = 11 : i64} {
  func.func @_max_dot_kernel(%arg0: i32, %arg1: i32, %arg2: memref<16x128xf32, #tpu.memory_space<vmem>>, %arg3: memref<128x128xf32, #tpu.memory_space<vmem>>, %arg4: memref<16x128xf32, #tpu.memory_space<vmem>>, %arg5: memref<16x128xf32, #tpu.memory_space<vmem>>) attributes {dimension_semantics = [#tpu.dimension_semantics<parallel>, #tpu.dimension_semantics<arbitrary>], iteration_bounds = array<i64: 1, 1>, scalar_prefetch = 0 : i64, scratch_operands = 1 : i64, tpu.core_type = #tpu.core_type<tc>, window_params = [{transform_indices = @transform_0, window_bounds = array<i64: 16, 128>}, {transform_indices = @transform_1, window_bounds = array<i64: 128, 128>}, {transform_indices = @transform_2, window_bounds = array<i64: 16, 128>}]} {
    %c0_i32 = arith.constant 0 : i32
    %0 = arith.cmpi eq, %arg1, %c0_i32 : i32
    %1 = arith.extui %0 : i1 to i32
    %c0_i32_0 = arith.constant 0 : i32
    %2 = arith.cmpi ne, %1, %c0_i32_0 : i32
    scf.if %2 {
      %cst_10 = arith.constant 0xFF800000 : f32
      %12 = vector.broadcast %cst_10 : f32 to vector<16x128xf32>
      %c0_11 = arith.constant 0 : index
      %c0_12 = arith.constant 0 : index
      %13 = vector.load %arg5[%c0_11, %c0_12] : memref<16x128xf32, #tpu.memory_space<vmem>>, vector<16x128xf32>
      tpu.vector_store %arg5[%c0_11, %c0_12], %12 {strides = array<i32>} : memref<16x128xf32, #tpu.memory_space<vmem>>, vector<16x128xf32>,
    } else {
    }
    %c0 = arith.constant 0 : index
    %c0_1 = arith.constant 0 : index
    %3 = vector.load %arg2[%c0, %c0_1] : memref<16x128xf32, #tpu.memory_space<vmem>>, vector<16x128xf32>
    %c0_2 = arith.constant 0 : index
    %c0_3 = arith.constant 0 : index
    %4 = vector.load %arg3[%c0_2, %c0_3] : memref<128x128xf32, #tpu.memory_space<vmem>>, vector<128x128xf32>
    %cst = arith.constant dense<0.000000e+00> : vector<16x128xf32>
    %5 = tpu.matmul %3, %4, %cst {dimension_numbers = #tpu.dot_dimension_numbers<[1], [1], [0], [0], [0, 0, 1, 0], [], []>} : vector<16x128xf32>, vector<128x128xf32>, vector<16x128xf32> -> vector<16x128xf32>
    %c0_4 = arith.constant 0 : index
    %c0_5 = arith.constant 0 : index
    %6 = vector.load %arg5[%c0_4, %c0_5] : memref<16x128xf32, #tpu.memory_space<vmem>>, vector<16x128xf32>
    %7 = arith.maximumf %6, %5 : vector<16x128xf32>
    %c0_6 = arith.constant 0 : index
    %c0_7 = arith.constant 0 : index
    %8 = vector.load %arg5[%c0_6, %c0_7] : memref<16x128xf32, #tpu.memory_space<vmem>>, vector<16x128xf32>
    tpu.vector_store %arg5[%c0_6, %c0_7], %7 {strides = array<i32>} : memref<16x128xf32, #tpu.memory_space<vmem>>, vector<16x128xf32>,
    %c0_i32_8 = arith.constant 0 : i32
    %9 = arith.cmpi eq, %arg1, %c0_i32_8 : i32
    %10 = arith.extui %9 : i1 to i32
    %c0_i32_9 = arith.constant 0 : i32
    %11 = arith.cmpi ne, %10, %c0_i32_9 : i32
    scf.if %11 {
      %c0_10 = arith.constant 0 : index
      %c0_11 = arith.constant 0 : index
      %12 = vector.load %arg5[%c0_10, %c0_11] : memref<16x128xf32, #tpu.memory_space<vmem>>, vector<16x128xf32>
      %c0_12 = arith.constant 0 : index
      %c0_13 = arith.constant 0 : index
      %13 = vector.load %arg4[%c0_12, %c0_13] : memref<16x128xf32, #tpu.memory_space<vmem>>, vector<16x128xf32>
      tpu.vector_store %arg4[%c0_12, %c0_13], %12 {strides = array<i32>} : memref<16x128xf32, #tpu.memory_space<vmem>>, vector<16x128xf32>,
    } else {
    }
    return
  }
  func.func @transform_0(%arg0: i32, %arg1: i32) -> (i32, i32) {
    %c0_i32 = arith.constant 0 : i32
    %c0_i32_0 = arith.constant 0 : i32
    return %arg0, %c0_i32 : i32, i32
  }
  func.func @transform_1(%arg0: i32, %arg1: i32) -> (i32, i32) {
    %c0_i32 = arith.constant 0 : i32
    %c0_i32_0 = arith.constant 0 : i32
    return %arg1, %c0_i32 : i32, i32
  }
  func.func @transform_2(%arg0: i32, %arg1: i32) -> (i32, i32) {
    %c0_i32 = arith.constant 0 : i32
    %c0_i32_0 = arith.constant 0 : i32
    return %arg0, %c0_i32 : i32, i32
  }
}

</mosaic_0001>

<llo_original>
// kernel: _classification_loss_fn.1
$region0: #{_classification_loss_fn.1}
  #allocation0 [shape = 'u32[]', space=smem, size = 0x4, offset = 0x4, fixed_abs, tag = 'smem constant byte address 0x4 - core index']
  #allocation1 [shape = 'u32[144,128]{1,0:T(1,128)}', space=vmem, size = 0x12000, scoped, tag = 'internal scratch']
  #allocation2 [shape = 'f32[16,128]{1,0:T(8,128)}', space=vmem, size = 0x2000, scoped, tag = 'scratch operand']
  %s0 = inlined_call_operand.vmem [shape: f32[16,128], index: 0, kind: input, shape index: {}]
  %s1 = inlined_call_operand.hbm [shape: f32[128,128], index: 1, kind: input, shape index: {}]
  %s2 = inlined_call_operand.vmem [shape: f32[16,128], index: 2, kind: output, shape index: {}]
  %s3 = sld [smem:[#allocation0]]
  $region30: #{_classification_loss_fn.1} parent=0
    _
  %s5 = ssub.s32 1, %s3
  %s6 = scalar_select 0, %s5, %s3
  $region1: #{_classification_loss_fn.1} parent=0
    #allocation3 [shape = 'u8[65536]{0}', space=vmem, size = 0x10000, scoped, tag = 'input window, operand 1, single buffered']
    #allocation4 [shape = 's32[1]{0}', space=sflag, size = 0x4, scoped, tag = 'scoped memory for _classification_loss_fn.1']
    %7 = vsyncpa [#allocation4], 0
    // Predicated region
    $region2: #{_classification_loss_fn.1} parent=1 // pred_check
      _
    $region3: #{_classification_loss_fn.1} parent=1 // pred_check_branch
      %9 = sbr.rel (0) target = $region5
    $region4: #{_classification_loss_fn.1} parent=1 // pred_region
      _
    $region5: #{_classification_loss_fn.1} parent=1 // pred_fallthru
      _
    // Predicated region
    $region6: #{_classification_loss_fn.1} parent=1 // pred_check
      _
    $region7: #{_classification_loss_fn.1} parent=1 // pred_check_branch
      %11 = sbr.rel (0) target = $region9
    $region8: #{_classification_loss_fn.1} parent=1 // pred_region
      %s13 = ssub.s32 2048, 2048
      %14 = vsyncadd [#allocation4], %s13
      %s15 = sshll.u32 [#allocation3], 4
      %s16 = int_to_ptr.vmem [resolvable:$true] %s15
      %21 = dma.hbm_to_vmem [thread:$0]  %s1, 2048, %s16, [#allocation4], 128, 128, 8
    $region9: #{_classification_loss_fn.1} parent=1 // pred_fallthru
      _
    // Predicated region
    $region10: #{_classification_loss_fn.1} parent=1 // pred_check
      _
    $region11: #{_classification_loss_fn.1} parent=1 // pred_check_branch
      %23 = sbr.rel (0) target = $region13
    $region12: #{_classification_loss_fn.1} parent=1 // pred_region
      %24 = dma.done [#allocation4], 2048
    $region13: #{_classification_loss_fn.1} parent=1 // pred_fallthru
      _
    %p25 = scmp.eq.s32.totalorder 0, 0
    // Predicated region
    $region14: #{_classification_loss_fn.1} parent=1 // pred_check
      %p26 = pneg %p25
    $region15: #{_classification_loss_fn.1} parent=1 // pred_check_branch
      %28 = sbr.rel (%p26) target = $region17
    $region16: #{_classification_loss_fn.1} parent=1 // pred_region
      %29 = vst [vmem:[#allocation2] sm:$0xff] -inf
      %30 = vst [vmem:[#allocation2 + $0x8] sm:$0xff] -inf
    $region17: #{_classification_loss_fn.1} parent=1 // pred_fallthru
      _
    %v31 = vld [vmem:[%s0] sm:$0xff]
    %v32 = vld [vmem:[%s0 + $0x8] sm:$0xff]
    %v33 = vld [vmem:[#allocation3] sm:$0xff]
    %v34 = vld [vmem:[#allocation3 + $0x8] sm:$0xff]
    %v35 = vld [vmem:[#allocation3 + $0x10] sm:$0xff]
    %v36 = vld [vmem:[#allocation3 + $0x18] sm:$0xff]
    %v37 = vld [vmem:[#allocation3 + $0x20] sm:$0xff]
    %v38 = vld [vmem:[#allocation3 + $0x28] sm:$0xff]
    %v39 = vld [vmem:[#allocation3 + $0x30] sm:$0xff]
    %v40 = vld [vmem:[#allocation3 + $0x38] sm:$0xff]
    %v41 = vld [vmem:[#allocation3 + $0x40] sm:$0xff]
    %v42 = vld [vmem:[#allocation3 + $0x48] sm:$0xff]
    %v43 = vld [vmem:[#allocation3 + $0x50] sm:$0xff]
    %v44 = vld [vmem:[#allocation3 + $0x58] sm:$0xff]
    %v45 = vld [vmem:[#allocation3 + $0x60] sm:$0xff]
    %v46 = vld [vmem:[#allocation3 + $0x68] sm:$0xff]
    %v47 = vld [vmem:[#allocation3 + $0x70] sm:$0xff]
    %v48 = vld [vmem:[#allocation3 + $0x78] sm:$0xff]
    %49 = vmatprep.subr.mxu0 0.0
    %50 = vmatpush1.xpose.msra.mxu0 %v33
    %51 = vmatprep.subr.mxu0 0.0
    %52 = vmatpush1.xpose.msra.mxu0 %v34
    %53 = vmatprep.subr.mxu0 0.0
    %54 = vmatpush1.xpose.msra.mxu0 %v35
    %55 = vmatprep.subr.mxu0 0.0
    %56 = vmatpush1.xpose.msra.mxu0 %v36
    %57 = vmatprep.subr.mxu0 0.0
    %58 = vmatpush1.xpose.msra.mxu0 %v37
    %59 = vmatprep.subr.mxu0 0.0
    %60 = vmatpush1.xpose.msra.mxu0 %v38
    %61 = vmatprep.subr.mxu0 0.0
    %62 = vmatpush1.xpose.msra.mxu0 %v39
    %63 = vmatprep.subr.mxu0 0.0
    %64 = vmatpush1.xpose.msra.mxu0 %v40
    %65 = vmatprep.subr.mxu0 0.0
    %66 = vmatpush1.xpose.msra.mxu0 %v41
    %67 = vmatprep.subr.mxu0 0.0
    %68 = vmatpush1.xpose.msra.mxu0 %v42
    %69 = vmatprep.subr.mxu0 0.0
    %70 = vmatpush1.xpose.msra.mxu0 %v43
    %71 = vmatprep.subr.mxu0 0.0
    %72 = vmatpush1.xpose.msra.mxu0 %v44
    %73 = vmatprep.subr.mxu0 0.0
    %74 = vmatpush1.xpose.msra.mxu0 %v45
    %75 = vmatprep.subr.mxu0 0.0
    %76 = vmatpush1.xpose.msra.mxu0 %v46
    %77 = vmatprep.subr.mxu0 0.0
    %78 = vmatpush1.xpose.msra.mxu0 %v47
    %79 = vmatprep.subr.mxu0 0.0
    %80 = vmatpush1.xpose.msra.mxu0 %v48
    %81 = vmatprep.subr.mxu0 0.0
    %82 = vmatpush1.xpose.msra.mxu0 0.0
    %83 = vmatprep.subr.mxu0 0.0
    %84 = vmatpush1.xpose.msra.mxu0 0.0
    %85 = vmatprep.subr.mxu0 0.0
    %86 = vmatpush1.xpose.msra.mxu0 0.0
    %87 = vmatprep.subr.mxu0 0.0
    %88 = vmatpush1.xpose.msra.mxu0 0.0
    %89 = vmatprep.subr.mxu0 0.0
    %90 = vmatpush1.xpose.msra.mxu0 0.0
    %91 = vmatprep.subr.mxu0 0.0
    %92 = vmatpush1.xpose.msra.mxu0 0.0
    %93 = vmatprep.subr.mxu0 0.0
    %94 = vmatpush1.xpose.msra.mxu0 0.0
    %95 = vmatprep.subr.mxu0 0.0
    %96 = vmatpush1.xpose.msra.mxu0 0.0
    %97 = vmatprep.subr.mxu0 0.0
    %98 = vmatpush1.xpose.msra.mxu0 0.0
    %99 = vmatprep.subr.mxu0 0.0
    %100 = vmatpush1.xpose.msra.mxu0 0.0
    %101 = vmatprep.subr.mxu0 0.0
    %102 = vmatpush1.xpose.msra.mxu0 0.0
    %103 = vmatprep.subr.mxu0 0.0
    %104 = vmatpush1.xpose.msra.mxu0 0.0
    %105 = vmatprep.subr.mxu0 0.0
    %106 = vmatpush1.xpose.msra.mxu0 0.0
    %107 = vmatprep.subr.mxu0 0.0
    %108 = vmatpush1.xpose.msra.mxu0 0.0
    %109 = vmatprep.subr.mxu0 0.0
    %110 = vmatpush1.xpose.msra.mxu0 0.0
    %111 = vmatprep.subr.mxu0 0.0
    %112 = vmatpush1.xpose.msra.mxu0 0.0
    %113 = vmatprep.mubr.f32.mxu0 0.0
    %114 = vmatmul.mubr.f32.gmra.mrb[0].mxu0 %v31
    %v115 = vpop.f32.mrb[0].mxu0
    %v116 = vadd.f32 0.0, %v115
    %v117 = vpop.f32.mrb[0].mxu0
    %118 = vmatprep.mubr.f32.mxu0 0.0
    %119 = vmatmul.mubr.f32.gmra.mrb[0].mxu0 %v32
    %v120 = vpop.f32.mrb[0].mxu0
    %v121 = vadd.f32 0.0, %v120
    %v122 = vpop.f32.mrb[0].mxu0
    %123 = vdwg.mxu0
    %v124 = vld [vmem:[#allocation2] sm:$0xff]
    %v125 = vld [vmem:[#allocation2 + $0x8] sm:$0xff]
    %v126 = vmax.f32 %v124, %v116
    %v127 = vmax.f32 %v125, %v121
    %128 = vst [vmem:[#allocation2] sm:$0xff] %v126
    %129 = vst [vmem:[#allocation2 + $0x8] sm:$0xff] %v127
    // Predicated region
    $region18: #{_classification_loss_fn.1} parent=1 // pred_check
      %p130 = pneg %p25
    $region19: #{_classification_loss_fn.1} parent=1 // pred_check_branch
      %132 = sbr.rel (%p130) target = $region21
    $region20: #{_classification_loss_fn.1} parent=1 // pred_region
      %v133 = vld [vmem:[#allocation2] sm:$0xff]
      %v134 = vld [vmem:[#allocation2 + $0x8] sm:$0xff]
      %135 = vst [vmem:[%s2] sm:$0xff] %v133
      %136 = vst [vmem:[%s2 + $0x8] sm:$0xff] %v134
    $region21: #{_classification_loss_fn.1} parent=1 // pred_fallthru
      _
    // Predicated region
    $region22: #{_classification_loss_fn.1} parent=1 // pred_check
      _
    $region23: #{_classification_loss_fn.1} parent=1 // pred_check_branch
      %138 = sbr.rel (0) target = $region25
    $region24: #{_classification_loss_fn.1} parent=1 // pred_region
      _
    $region25: #{_classification_loss_fn.1} parent=1 // pred_fallthru
      _
    // Predicated region
    $region26: #{_classification_loss_fn.1} parent=1 // pred_check
      _
    $region27: #{_classification_loss_fn.1} parent=1 // pred_check_branch
      %140 = sbr.rel (0) target = $region29
    $region28: #{_classification_loss_fn.1} parent=1 // pred_region
      _
    $region29: #{_classification_loss_fn.1} parent=1 // pred_fallthru
      _
    %141 = vsyncpa [#allocation4], 1

</llo_original>
